<compile_context>
chip_gen: v5e
topology: v5e:2x2
jax: 0.10.0
libtpu: 0.0.40
codegen_flags: <defaults>
</compile_context>

<pallas_src>
import functools

import jax
import jax.numpy as jnp
from jax.experimental import pallas as pl
from jax.experimental.pallas import tpu as pltpu

IGNORE_INDEX = -100
NEG_FILL = -1e30  # masked-column logit; exp(NEG_FILL - max) underflows to 0


def _round_up(x, m):
    return ((x + m - 1) // m) * m


def _default_budgets():
    """(logits_vmem_budget, max_class_tile, vmem_limit_bytes) per generation."""
    try:
        vmem_cap = int(pltpu.get_tpu_info().vmem_capacity_bytes)
    except Exception:
        vmem_cap = 64 * 1024 * 1024  # conservative fallback (v7x-sized)
    if vmem_cap >= 100 * 1024 * 1024:      # v5e / v6e: 128 MiB VMEM
        return 32 * 1024 * 1024, 8192, 64 * 1024 * 1024
    return 12 * 1024 * 1024, 2048, 48 * 1024 * 1024   # v7x: 64 MiB per TC


def ce_kernel(logits_ref, targets_ref, weff_ref, loss_out, wsum_out,
              m_sc, l_sc, tl_sc, *, n, c):
    i = pl.program_id(0)   # batch block ("parallel")
    j = pl.program_id(1)   # class block (streaming reduction axis, innermost)

    @pl.when(j == 0)
    def _():
        m_sc[...] = jnp.full_like(m_sc, -jnp.inf)
        l_sc[...] = jnp.zeros_like(l_sc)
        tl_sc[...] = jnp.zeros_like(tl_sc)

    logits = logits_ref[...].astype(jnp.float32)      # (TN, TC)
    tgt = targets_ref[...]                            # (TN, 1) int32
    tn, tc = logits.shape

    col = jax.lax.broadcasted_iota(jnp.int32, (tn, tc), 1)

    # Ragged C: neutralize garbage tail columns (emitted only if needed).
    if c % tc != 0:
        logits = jnp.where(col < (c - j * tc), logits, NEG_FILL)

    # Target-logit gather via a bool mask; block offset applied on the (TN,1)
    # side so there is no extra per-element add over the (TN,TC) tile.
    mask = col == (tgt - j * tc)
    tl_sc[...] += jnp.sum(jnp.where(mask, logits, 0.0), axis=-1, keepdims=True)

    # Streaming (online) logsumexp across class blocks.
    m_local = jnp.max(logits, axis=-1, keepdims=True)
    m_new = jnp.maximum(m_sc[...], m_local)
    l_sc[...] = (l_sc[...] * jnp.exp(m_sc[...] - m_new)
                 + jnp.sum(jnp.exp(logits - m_new), axis=-1, keepdims=True))
    m_sc[...] = m_new

    @pl.when(j == pl.num_programs(1) - 1)
    def _():
        lse = m_sc[...] + jnp.log(l_sc[...])          # (TN, 1)
        w_eff = weff_ref[...]                         # (TN, 1); 0 for ignored rows
        loss = w_eff * (lse - tl_sc[...])
        wsum = w_eff
        if n % tn != 0:
            # Ragged N: zero the garbage tail rows of the last batch block.
            row = jax.lax.broadcasted_iota(jnp.int32, (tn, 1), 0)
            row_ok = (i * tn + row) < n
            loss = jnp.where(row_ok, loss, 0.0)
            wsum = jnp.where(row_ok, wsum, 0.0)
        # Lane-dense per-block partial sums (reduced in the wrapper).
        loss_out[...] = jnp.broadcast_to(jnp.sum(loss), loss_out.shape)
        wsum_out[...] = jnp.broadcast_to(jnp.sum(wsum), wsum_out.shape)


def cross_entropy_loss(logits, targets, weight=None, *,
                       reduction="elementwise_mean",
                       ignore_index=IGNORE_INDEX,
                       max_batch_tile=1024,
                       max_class_tile=None,
                       vmem_logits_budget=None):
    """logits: (N, C) or (N, C, d1..dk) float32/bf16; targets: (N,) / (N, d1..dk) int.

    NOTE: out-of-range non-ignore targets are UB (clipped by the weight gather,
    zero target-logit contribution); all-ignored batches return NaN under mean
    reduction — both match PyTorch's (undefined / documented) behaviour.
    """
    if logits.ndim > 2:
        # (N, C, d1, ..., dk) -> (N*d1*...*dk, C), as nn.CrossEntropyLoss does.
        perm = (0,) + tuple(range(2, logits.ndim)) + (1,)
        logits = jnp.transpose(logits, perm).reshape(-1, logits.shape[1])
        targets = targets.reshape(-1)

    n, c = logits.shape
    itemsize = jnp.dtype(logits.dtype).itemsize

    budget_default, class_tile_default, vmem_limit = _default_budgets()
    if vmem_logits_budget is None:
        vmem_logits_budget = budget_default
    if max_class_tile is None:
        max_class_tile = class_tile_default

    # Class tiling: lane-aligned blocks; single block when C fits the budget,
    # streamed (online LSE) otherwise.  No padded copy of the logits.
    tile_c = int(min(_round_up(max_class_tile, 128), _round_up(c, 128)))
    c_blocks = pl.cdiv(c, tile_c)

    # Batch tiling: largest tile (multiple of 16 rows so bf16 packs cleanly)
    # whose double-buffered logits tile fits the VMEM budget, re-balanced so
    # blocks are even and (for v7x's 2 TensorCores) there are >= 2 parallel
    # batch blocks once N is big enough.
    rows = vmem_logits_budget // (2 * tile_c * itemsize)
    tile_n_max = int(min(max_batch_tile, max(16, (rows // 16) * 16)))
    tile_n_max = max(16, (tile_n_max // 16) * 16)
    min_blocks = 2 if n >= 128 else 1
    num_blocks = max(pl.cdiv(n, tile_n_max), min_blocks)
    tile_n = _round_up(pl.cdiv(n, num_blocks), 16)
    n_blocks = pl.cdiv(n, tile_n)

    # Per-sample effective weight gathered in the wrapper (N-length gather
    # instead of a per-element masked reduction over (N, C) in the kernel).
    tgt32 = targets.astype(jnp.int32)
    valid = tgt32 != ignore_index
    safe_t = jnp.where(valid, tgt32, 0)
    if weight is None:
        w_eff = valid.astype(jnp.float32)
    else:
        w_eff = weight.astype(jnp.float32)[safe_t] * valid.astype(jnp.float32)

    targets_2d = tgt32.reshape(n, 1)
    w_eff_2d = w_eff.reshape(n, 1)

    kernel = functools.partial(ce_kernel, n=n, c=c)

    loss_parts, w_parts = pl.pallas_call(
        kernel,
        out_shape=(jax.ShapeDtypeStruct((n_blocks, 8, 128), jnp.float32),
                   jax.ShapeDtypeStruct((n_blocks, 8, 128), jnp.float32)),
        grid_spec=pltpu.PrefetchScalarGridSpec(
            num_scalar_prefetch=0,
            grid=(n_blocks, c_blocks),
            in_specs=[
                pl.BlockSpec((tile_n, tile_c), lambda i, j: (i, j)),  # logits
                pl.BlockSpec((tile_n, 1), lambda i, j: (i, 0)),       # targets
                pl.BlockSpec((tile_n, 1), lambda i, j: (i, 0)),       # w_eff
            ],
            out_specs=[
                pl.BlockSpec((1, 8, 128), lambda i, j: (i, 0, 0)),
                pl.BlockSpec((1, 8, 128), lambda i, j: (i, 0, 0)),
            ],
            scratch_shapes=[pltpu.VMEM((tile_n, 1), jnp.float32)] * 3,
        ),
        compiler_params=pltpu.CompilerParams(
            dimension_semantics=("parallel", "arbitrary"),
            vmem_limit_bytes=vmem_limit),
    )(logits, targets_2d, w_eff_2d)

    total_loss = jnp.sum(loss_parts[:, 0, 0])
    total_w = jnp.sum(w_parts[:, 0, 0])
    if reduction in ("elementwise_mean", "mean"):
        # Matches PyTorch: weighted mean over non-ignored samples.
        return total_loss / total_w
    if reduction == "sum":
        return total_loss
    # TODO(synk): reduction='none' (per-sample losses) not implemented.
    raise ValueError(f"unsupported reduction: {reduction}")


def _reference(logits, targets, weight, ignore_index=IGNORE_INDEX):
    logits = logits.astype(jnp.float32)
    lse = jax.scipy.special.logsumexp(logits, axis=-1)
    valid = targets != ignore_index
    safe_t = jnp.where(valid, targets, 0)
    tgt_logit = jnp.take_along_axis(logits, safe_t[:, None], axis=-1)[:, 0]
    w = weight[safe_t] * valid.astype(jnp.float32)
    loss = w * (lse - tgt_logit)
    return jnp.sum(loss) / jnp.sum(w)


if __name__ == "__main__":
    key = jax.random.PRNGKey(0)
    k1, k2, k3 = jax.random.split(key, 3)

    # ---- Test 1: f32 logits, non-tile-aligned N and C, class weights ----
    N, C = 18, 37
    logits = jax.random.normal(k1, (N, C), dtype=jnp.float32)
    targets = jax.random.randint(k2, (N,), 0, C, dtype=jnp.int32)
    targets = targets.at[3].set(IGNORE_INDEX)            # exercise ignore_index
    weight = 0.5 + jax.random.uniform(k3, (C,), dtype=jnp.float32)

    loss = jax.block_until_ready(cross_entropy_loss(logits, targets, weight))
    ref = _reference(logits, targets, weight)
    assert jnp.allclose(loss, ref, rtol=1e-5, atol=1e-5), (loss, ref)

    # ---- Test 2: bf16 logits (half the HBM traffic; f32 compute in-kernel) ----
    logits_bf16 = logits.astype(jnp.bfloat16)
    loss_bf16 = jax.block_until_ready(
        cross_entropy_loss(logits_bf16, targets, weight))
    ref_bf16 = _reference(logits_bf16.astype(jnp.float32), targets, weight)
    assert jnp.allclose(loss_bf16, ref_bf16, rtol=1e-4, atol=1e-4), \
        (loss_bf16, ref_bf16)

    # ---- Test 3: multiple batch + class blocks (streaming LSE, ragged tails,
    #      parallel per-block partial sums), no class weights ----
    N2, C2 = 40, 300
    logits2 = jax.random.normal(k1, (N2, C2), dtype=jnp.float32)
    targets2 = jax.random.randint(k2, (N2,), 0, C2, dtype=jnp.int32)
    targets2 = targets2.at[0].set(IGNORE_INDEX)
    loss2 = jax.block_until_ready(
        cross_entropy_loss(logits2, targets2, None,
                           max_batch_tile=16, max_class_tile=128))
    ref2 = _reference(logits2, targets2, jnp.ones((C2,), jnp.float32))
    assert jnp.allclose(loss2, ref2, rtol=1e-4, atol=1e-5), (loss2, ref2)

    # ---- Test 4: spatial (segmentation-style) inputs (N, C, H, W) + sum ----
    N3, C3, H3, W3 = 2, 5, 8, 8
    logits3 = jax.random.normal(k3, (N3, C3, H3, W3), dtype=jnp.float32)
    targets3 = jax.random.randint(k2, (N3, H3, W3), 0, C3, dtype=jnp.int32)
    loss3 = jax.block_until_ready(cross_entropy_loss(logits3, targets3, None))
    lf = jnp.transpose(logits3, (0, 2, 3, 1)).reshape(-1, C3)
    tf = targets3.reshape(-1)
    ref3 = _reference(lf, tf, jnp.ones((C3,), jnp.float32))
    assert jnp.allclose(loss3, ref3, rtol=1e-5, atol=1e-5), (loss3, ref3)

    loss3_sum = jax.block_until_ready(
        cross_entropy_loss(logits3, targets3, None, reduction="sum"))
    assert jnp.allclose(loss3_sum, ref3 * tf.shape[0], rtol=1e-5, atol=1e-4)

    print("KERNEL_OK")
</pallas_src>

<mosaic_0001>
module attributes {stable_mosaic.version = 11 : i64} {
  func.func @ce_kernel(%arg0: i32, %arg1: i32, %arg2: memref<32x128xf32, #tpu.memory_space<vmem>>, %arg3: memref<32x1xi32, #tpu.memory_space<vmem>>, %arg4: memref<32x1xf32, #tpu.memory_space<vmem>>, %arg5: memref<1x8x128xf32, #tpu.memory_space<vmem>>, %arg6: memref<1x8x128xf32, #tpu.memory_space<vmem>>, %arg7: memref<32x1xf32, #tpu.memory_space<vmem>>, %arg8: memref<32x1xf32, #tpu.memory_space<vmem>>, %arg9: memref<32x1xf32, #tpu.memory_space<vmem>>) attributes {dimension_semantics = [#tpu.dimension_semantics<parallel>, #tpu.dimension_semantics<arbitrary>], iteration_bounds = array<i64: 1, 1>, scalar_prefetch = 0 : i64, scratch_operands = 3 : i64, tpu.core_type = #tpu.core_type<tc>, window_params = [{transform_indices = @transform_0, window_bounds = array<i64: 32, 128>}, {transform_indices = @transform_1, window_bounds = array<i64: 32, 1>}, {transform_indices = @transform_2, window_bounds = array<i64: 32, 1>}, {transform_indices = @transform_3, window_bounds = array<i64: 1, 8, 128>}, {transform_indices = @transform_4, window_bounds = array<i64: 1, 8, 128>}]} {
    %c0_i32 = arith.constant 0 : i32
    %0 = arith.cmpi eq, %arg1, %c0_i32 : i32
    %1 = arith.extui %0 : i1 to i32
    %c0_i32_0 = arith.constant 0 : i32
    %2 = arith.cmpi ne, %1, %c0_i32_0 : i32
    scf.if %2 {
      %cst_25 = arith.constant 0xFF800000 : f32
      %44 = vector.broadcast %cst_25 : f32 to vector<32x1xf32>
      %c0_26 = arith.constant 0 : index
      %c0_27 = arith.constant 0 : index
      %45 = vector.load %arg7[%c0_26, %c0_27] : memref<32x1xf32, #tpu.memory_space<vmem>>, vector<32x1xf32>
      tpu.vector_store %arg7[%c0_26, %c0_27], %44 {strides = array<i32>} : memref<32x1xf32, #tpu.memory_space<vmem>>, vector<32x1xf32>,
      %cst_28 = arith.constant 0.000000e+00 : f32
      %46 = vector.broadcast %cst_28 : f32 to vector<32x1xf32>
      %c0_29 = arith.constant 0 : index
      %c0_30 = arith.constant 0 : index
      %47 = vector.load %arg8[%c0_29, %c0_30] : memref<32x1xf32, #tpu.memory_space<vmem>>, vector<32x1xf32>
      tpu.vector_store %arg8[%c0_29, %c0_30], %46 {strides = array<i32>} : memref<32x1xf32, #tpu.memory_space<vmem>>, vector<32x1xf32>,
      %cst_31 = arith.constant 0.000000e+00 : f32
      %48 = vector.broadcast %cst_31 : f32 to vector<32x1xf32>
      %c0_32 = arith.constant 0 : index
      %c0_33 = arith.constant 0 : index
      %49 = vector.load %arg9[%c0_32, %c0_33] : memref<32x1xf32, #tpu.memory_space<vmem>>, vector<32x1xf32>
      tpu.vector_store %arg9[%c0_32, %c0_33], %48 {strides = array<i32>} : memref<32x1xf32, #tpu.memory_space<vmem>>, vector<32x1xf32>,
    } else {
    }
    %c0 = arith.constant 0 : index
    %c0_1 = arith.constant 0 : index
    %3 = vector.load %arg2[%c0, %c0_1] : memref<32x128xf32, #tpu.memory_space<vmem>>, vector<32x128xf32>
    %c0_2 = arith.constant 0 : index
    %c0_3 = arith.constant 0 : index
    %4 = vector.load %arg3[%c0_2, %c0_3] : memref<32x1xi32, #tpu.memory_space<vmem>>, vector<32x1xi32>
    %5 = tpu.iota {dimensions = array<i32: 1>} : vector<32x128xi32>
    %c128_i32 = arith.constant 128 : i32
    %6 = arith.muli %arg1, %c128_i32 : i32
    %c37_i32 = arith.constant 37 : i32
    %7 = arith.subi %c37_i32, %6 : i32
    %8 = vector.broadcast %7 : i32 to vector<32x128xi32>
    %9 = arith.cmpi slt, %5, %8 : vector<32x128xi32>
    %cst = arith.constant -1.000000e+30 : f32
    %10 = vector.broadcast %cst : f32 to vector<32x128xf32>
    %11 = arith.select %9, %3, %10 : vector<32x128xi1>, vector<32x128xf32>
    %c128_i32_4 = arith.constant 128 : i32
    %12 = arith.muli %arg1, %c128_i32_4 : i32
    %13 = vector.broadcast %12 : i32 to vector<32x1xi32>
    %14 = arith.subi %4, %13 : vector<32x1xi32>
    %15 = vector.broadcast %14 : vector<32x1xi32> to vector<32x128xi32>
    %16 = arith.cmpi eq, %5, %15 : vector<32x128xi32>
    %c0_5 = arith.constant 0 : index
    %c0_6 = arith.constant 0 : index
    %17 = vector.load %arg9[%c0_5, %c0_6] : memref<32x1xf32, #tpu.memory_space<vmem>>, vector<32x1xf32>
    %cst_7 = arith.constant 0.000000e+00 : f32
    %18 = vector.broadcast %cst_7 : f32 to vector<32x128xf32>
    %19 = arith.select %16, %11, %18 : vector<32x128xi1>, vector<32x128xf32>
    %cst_8 = arith.constant dense<0.000000e+00> : vector<32xf32>
    %20 = vector.multi_reduction <add>, %19, %cst_8 [1] : vector<32x128xf32> to vector<32xf32>
    %21 = vector.shape_cast %20 : vector<32xf32> to vector<32x1xf32>
    %22 = arith.addf %17, %21 : vector<32x1xf32>
    %c0_9 = arith.constant 0 : index
    %c0_10 = arith.constant 0 : index
    %23 = vector.load %arg9[%c0_9, %c0_10] : memref<32x1xf32, #tpu.memory_space<vmem>>, vector<32x1xf32>
    tpu.vector_store %arg9[%c0_9, %c0_10], %22 {strides = array<i32>} : memref<32x1xf32, #tpu.memory_space<vmem>>, vector<32x1xf32>,
    %cst_11 = arith.constant dense<0xFF800000> : vector<32xf32>
    %24 = vector.multi_reduction <maximumf>, %11, %cst_11 [1] : vector<32x128xf32> to vector<32xf32>
    %25 = vector.shape_cast %24 : vector<32xf32> to vector<32x1xf32>
    %c0_12 = arith.constant 0 : index
    %c0_13 = arith.constant 0 : index
    %26 = vector.load %arg7[%c0_12, %c0_13] : memref<32x1xf32, #tpu.memory_space<vmem>>, vector<32x1xf32>
    %27 = arith.maximumf %26, %25 : vector<32x1xf32>
    %c0_14 = arith.constant 0 : index
    %c0_15 = arith.constant 0 : index
    %28 = vector.load %arg8[%c0_14, %c0_15] : memref<32x1xf32, #tpu.memory_space<vmem>>, vector<32x1xf32>
    %c0_16 = arith.constant 0 : index
    %c0_17 = arith.constant 0 : index
    %29 = vector.load %arg7[%c0_16, %c0_17] : memref<32x1xf32, #tpu.memory_space<vmem>>, vector<32x1xf32>
    %30 = arith.subf %29, %27 : vector<32x1xf32>
    %31 = math.exp %30 : vector<32x1xf32>
    %32 = arith.mulf %28, %31 : vector<32x1xf32>
    %33 = vector.broadcast %27 : vector<32x1xf32> to vector<32x128xf32>
    %34 = arith.subf %11, %33 : vector<32x128xf32>
    %35 = math.exp %34 : vector<32x128xf32>
    %cst_18 = arith.constant dense<0.000000e+00> : vector<32xf32>
    %36 = vector.multi_reduction <add>, %35, %cst_18 [1] : vector<32x128xf32> to vector<32xf32>
    %37 = vector.shape_cast %36 : vector<32xf32> to vector<32x1xf32>
    %38 = arith.addf %32, %37 : vector<32x1xf32>
    %c0_19 = arith.constant 0 : index
    %c0_20 = arith.constant 0 : index
    %39 = vector.load %arg8[%c0_19, %c0_20] : memref<32x1xf32, #tpu.memory_space<vmem>>, vector<32x1xf32>
    tpu.vector_store %arg8[%c0_19, %c0_20], %38 {strides = array<i32>} : memref<32x1xf32, #tpu.memory_space<vmem>>, vector<32x1xf32>,
    %c0_21 = arith.constant 0 : index
    %c0_22 = arith.constant 0 : index
    %40 = vector.load %arg7[%c0_21, %c0_22] : memref<32x1xf32, #tpu.memory_space<vmem>>, vector<32x1xf32>
    tpu.vector_store %arg7[%c0_21, %c0_22], %27 {strides = array<i32>} : memref<32x1xf32, #tpu.memory_space<vmem>>, vector<32x1xf32>,
    %c0_i32_23 = arith.constant 0 : i32
    %41 = arith.cmpi eq, %arg1, %c0_i32_23 : i32
    %42 = arith.extui %41 : i1 to i32
    %c0_i32_24 = arith.constant 0 : i32
    %43 = arith.cmpi ne, %42, %c0_i32_24 : i32
    scf.if %43 {
      %c0_25 = arith.constant 0 : index
      %c0_26 = arith.constant 0 : index
      %44 = vector.load %arg7[%c0_25, %c0_26] : memref<32x1xf32, #tpu.memory_space<vmem>>, vector<32x1xf32>
      %c0_27 = arith.constant 0 : index
      %c0_28 = arith.constant 0 : index
      %45 = vector.load %arg8[%c0_27, %c0_28] : memref<32x1xf32, #tpu.memory_space<vmem>>, vector<32x1xf32>
      %46 = math.log %45 : vector<32x1xf32>
      %47 = arith.addf %44, %46 : vector<32x1xf32>
      %c0_29 = arith.constant 0 : index
      %c0_30 = arith.constant 0 : index
      %48 = vector.load %arg4[%c0_29, %c0_30] : memref<32x1xf32, #tpu.memory_space<vmem>>, vector<32x1xf32>
      %c0_31 = arith.constant 0 : index
      %c0_32 = arith.constant 0 : index
      %49 = vector.load %arg9[%c0_31, %c0_32] : memref<32x1xf32, #tpu.memory_space<vmem>>, vector<32x1xf32>
      %50 = arith.subf %47, %49 : vector<32x1xf32>
      %51 = arith.mulf %48, %50 : vector<32x1xf32>
      %52 = tpu.iota {dimensions = array<i32: 0>} : vector<32x1xi32>
      %c32_i32 = arith.constant 32 : i32
      %53 = arith.muli %arg0, %c32_i32 : i32
      %54 = vector.broadcast %53 : i32 to vector<32x1xi32>
      %55 = arith.addi %54, %52 : vector<32x1xi32>
      %c18_i32 = arith.constant 18 : i32
      %56 = vector.broadcast %c18_i32 : i32 to vector<32x1xi32>
      %57 = arith.cmpi slt, %55, %56 : vector<32x1xi32>
      %cst_33 = arith.constant 0.000000e+00 : f32
      %58 = vector.broadcast %cst_33 : f32 to vector<32x1xf32>
      %59 = arith.select %57, %51, %58 : vector<32x1xi1>, vector<32x1xf32>
      %cst_34 = arith.constant 0.000000e+00 : f32
      %60 = vector.broadcast %cst_34 : f32 to vector<32x1xf32>
      %61 = arith.select %57, %48, %60 : vector<32x1xi1>, vector<32x1xf32>
      %62 = vector.shape_cast %59 : vector<32x1xf32> to vector<1x32x1xf32>
      %cst_35 = arith.constant dense<0.000000e+00> : vector<1xf32>
      %63 = vector.multi_reduction <add>, %62, %cst_35 [1, 2] : vector<1x32x1xf32> to vector<1xf32>
      %64 = vector.shape_cast %63 : vector<1xf32> to vector<1x1x1xf32>
      %65 = vector.extract %64[0, 0, 0] : f32 from vector<1x1x1xf32>
      %66 = vector.broadcast %65 : f32 to vector<1x8x128xf32>
      %c0_36 = arith.constant 0 : index
      %c0_37 = arith.constant 0 : index
      %c0_38 = arith.constant 0 : index
      %67 = vector.load %arg5[%c0_36, %c0_37, %c0_38] : memref<1x8x128xf32, #tpu.memory_space<vmem>>, vector<1x8x128xf32>
      tpu.vector_store %arg5[%c0_36, %c0_37, %c0_38], %66 {strides = array<i32>} : memref<1x8x128xf32, #tpu.memory_space<vmem>>, vector<1x8x128xf32>,
      %68 = vector.shape_cast %61 : vector<32x1xf32> to vector<1x32x1xf32>
      %cst_39 = arith.constant dense<0.000000e+00> : vector<1xf32>
      %69 = vector.multi_reduction <add>, %68, %cst_39 [1, 2] : vector<1x32x1xf32> to vector<1xf32>
      %70 = vector.shape_cast %69 : vector<1xf32> to vector<1x1x1xf32>
      %71 = vector.extract %70[0, 0, 0] : f32 from vector<1x1x1xf32>
      %72 = vector.broadcast %71 : f32 to vector<1x8x128xf32>
      %c0_40 = arith.constant 0 : index
      %c0_41 = arith.constant 0 : index
      %c0_42 = arith.constant 0 : index
      %73 = vector.load %arg6[%c0_40, %c0_41, %c0_42] : memref<1x8x128xf32, #tpu.memory_space<vmem>>, vector<1x8x128xf32>
      tpu.vector_store %arg6[%c0_40, %c0_41, %c0_42], %72 {strides = array<i32>} : memref<1x8x128xf32, #tpu.memory_space<vmem>>, vector<1x8x128xf32>,
    } else {
    }
    return
  }
  func.func @transform_0(%arg0: i32, %arg1: i32) -> (i32, i32) {
    %c0_i32 = arith.constant 0 : i32
    return %arg0, %arg1 : i32, i32
  }
  func.func @transform_1(%arg0: i32, %arg1: i32) -> (i32, i32) {
    %c0_i32 = arith.constant 0 : i32
    %c0_i32_0 = arith.constant 0 : i32
    return %arg0, %c0_i32 : i32, i32
  }
  func.func @transform_2(%arg0: i32, %arg1: i32) -> (i32, i32) {
    %c0_i32 = arith.constant 0 : i32
    %c0_i32_0 = arith.constant 0 : i32
    return %arg0, %c0_i32 : i32, i32
  }
  func.func @transform_3(%arg0: i32, %arg1: i32) -> (i32, i32, i32) {
    %c0_i32 = arith.constant 0 : i32
    %c0_i32_0 = arith.constant 0 : i32
    %c0_i32_1 = arith.constant 0 : i32
    return %arg0, %c0_i32, %c0_i32_0 : i32, i32, i32
  }
  func.func @transform_4(%arg0: i32, %arg1: i32) -> (i32, i32, i32) {
    %c0_i32 = arith.constant 0 : i32
    %c0_i32_0 = arith.constant 0 : i32
    %c0_i32_1 = arith.constant 0 : i32
    return %arg0, %c0_i32, %c0_i32_0 : i32, i32, i32
  }
}

</mosaic_0001>

<llo_original>
// kernel: tpu_custom_call.1
$region0: #{tpu_custom_call.1}
  #allocation0 [shape = 'u32[]', space=smem, size = 0x4, offset = 0x4, fixed_abs, tag = 'smem constant byte address 0x4 - core index']
  #allocation1 [shape = 'u32[72,128]{1,0:T(1,128)}', space=vmem, size = 0x9000, scoped, tag = 'internal scratch']
  #allocation2 [shape = 'f32[32,1]{1,0:T(8,128)}', space=vmem, size = 0x4000, scoped, tag = 'scratch operand']
  #allocation3 [shape = 'f32[32,1]{1,0:T(8,128)}', space=vmem, size = 0x4000, scoped, tag = 'scratch operand']
  #allocation4 [shape = 'f32[32,1]{1,0:T(8,128)}', space=vmem, size = 0x4000, scoped, tag = 'scratch operand']
  %s0 = inlined_call_operand.vmem [shape: f32[18,37], index: 0, kind: input, shape index: {}]
  %s1 = inlined_call_operand.vmem [shape: s32[18,1], index: 1, kind: input, shape index: {}]
  %s2 = inlined_call_operand.vmem [shape: f32[18,1], index: 2, kind: input, shape index: {}]
  %s3 = inlined_call_operand.hbm [shape: f32[1,8,128], index: 3, kind: output, shape index: {0}]
  %s4 = inlined_call_operand.hbm [shape: f32[1,8,128], index: 4, kind: output, shape index: {1}]
  %5 = xla_tuple %s3, %s4
  %s6 = sld [smem:[#allocation0]]
  $region38: #{tpu_custom_call.1} parent=0
    _
  %s8 = ssub.s32 1, %s6
  %s9 = scalar_select 0, %s8, %s6
  $region1: #{tpu_custom_call.1} parent=0
    #allocation5 [shape = 'u8[4096]{0}', space=vmem, size = 0x1000, scoped, tag = 'output window, operand 0, single buffered']
    #allocation6 [shape = 's32[1]{0}', space=sflag, size = 0x4, scoped, tag = 'scoped memory for tpu_custom_call.1']
    #allocation7 [shape = 'u8[4096]{0}', space=vmem, size = 0x1000, scoped, tag = 'output window, operand 1, single buffered']
    #allocation8 [shape = 's32[1]{0}', space=sflag, size = 0x4, scoped, tag = 'scoped memory for tpu_custom_call.1']
    %10 = vsyncpa [#allocation6], 0
    %11 = vsyncpa [#allocation8], 0
    // Predicated region
    $region2: #{tpu_custom_call.1} parent=1 // pred_check
      _
    $region3: #{tpu_custom_call.1} parent=1 // pred_check_branch
      %13 = sbr.rel (0) target = $region5
    $region4: #{tpu_custom_call.1} parent=1 // pred_region
      _
    $region5: #{tpu_custom_call.1} parent=1 // pred_fallthru
      _
    // Predicated region
    $region6: #{tpu_custom_call.1} parent=1 // pred_check
      _
    $region7: #{tpu_custom_call.1} parent=1 // pred_check_branch
      %15 = sbr.rel (0) target = $region9
    $region8: #{tpu_custom_call.1} parent=1 // pred_region
      _
    $region9: #{tpu_custom_call.1} parent=1 // pred_fallthru
      _
    // Predicated region
    $region10: #{tpu_custom_call.1} parent=1 // pred_check
      _
    $region11: #{tpu_custom_call.1} parent=1 // pred_check_branch
      %17 = sbr.rel (0) target = $region13
    $region12: #{tpu_custom_call.1} parent=1 // pred_region
      _
    $region13: #{tpu_custom_call.1} parent=1 // pred_fallthru
      _
    %p18 = scmp.eq.s32.totalorder 0, 0
    // Predicated region
    $region14: #{tpu_custom_call.1} parent=1 // pred_check
      %p19 = pneg %p18
    $region15: #{tpu_custom_call.1} parent=1 // pred_check_branch
      %21 = sbr.rel (%p19) target = $region17
    $region16: #{tpu_custom_call.1} parent=1 // pred_region
      %vm22 = vcmask 7168
      %23 = vst.msk [vmem:[#allocation2] sm:$0xff] %vm22, -inf
      %24 = vst.msk [vmem:[#allocation2 + $0x8] sm:$0xff] %vm22, -inf
      %25 = vst.msk [vmem:[#allocation2 + $0x10] sm:$0xff] %vm22, -inf
      %26 = vst.msk [vmem:[#allocation2 + $0x18] sm:$0xff] %vm22, -inf
      %27 = vst.msk [vmem:[#allocation3] sm:$0xff] %vm22, 0.0
      %28 = vst.msk [vmem:[#allocation3 + $0x8] sm:$0xff] %vm22, 0.0
      %29 = vst.msk [vmem:[#allocation3 + $0x10] sm:$0xff] %vm22, 0.0
      %30 = vst.msk [vmem:[#allocation3 + $0x18] sm:$0xff] %vm22, 0.0
      %31 = vst.msk [vmem:[#allocation4] sm:$0xff] %vm22, 0.0
      %32 = vst.msk [vmem:[#allocation4 + $0x8] sm:$0xff] %vm22, 0.0
      %33 = vst.msk [vmem:[#allocation4 + $0x10] sm:$0xff] %vm22, 0.0
      %34 = vst.msk [vmem:[#allocation4 + $0x18] sm:$0xff] %vm22, 0.0
    $region17: #{tpu_custom_call.1} parent=1 // pred_fallthru
      _
    %v35 = vld [vmem:[%s0] sm:$0xff]
    %v36 = vld [vmem:[%s0 + $0x8] sm:$0xff]
    %v37 = vld [vmem:[%s0 + $0x10] sm:$0xff]
    %v38 = vld [vmem:[%s0 + $0x18] sm:$0xff]
    %v39 = vld [vmem:[%s1] sm:$0xff]
    %v40 = vld [vmem:[%s1 + $0x8] sm:$0xff]
    %v41 = vld [vmem:[%s1 + $0x10] sm:$0xff]
    %v42 = vld [vmem:[%s1 + $0x18] sm:$0xff]
    %v43 = vlaneseq
    %v44 = vand.u32 %v43, 127
    %s45 = smul.u32 0, 128
    %s46 = ssub.s32 37, %s45
    %v47 = vstv %s46
    %vm48 = vcmp.lt.s32.totalorder %v44, %v47
    %v49 = vsel %vm48, %v35, -1e+30
    %v50 = vsel %vm48, %v36, -1e+30
    %v51 = vsel %vm48, %v37, -1e+30
    %v52 = vsel %vm48, %v38, -1e+30
    %v53 = vstv %s45
    %v54 = vsub.s32 %v39, %v53
    %v55 = vsub.s32 %v40, %v53
    %v56 = vsub.s32 %v41, %v53
    %v57 = vsub.s32 %v42, %v53
    %58 = vset.pattern.permute.xlu0 0
    %59 = vperm.xlu0 %58, %v54
    %v60 = vpop.permute.xlu0 %59
    %61 = vset.pattern.permute.xlu0 0
    %62 = vperm.xlu0 %61, %v55
    %v63 = vpop.permute.xlu0 %62
    %64 = vset.pattern.permute.xlu0 0
    %65 = vperm.xlu0 %64, %v56
    %v66 = vpop.permute.xlu0 %65
    %67 = vset.pattern.permute.xlu0 0
    %68 = vperm.xlu0 %67, %v57
    %v69 = vpop.permute.xlu0 %68
    %vm70 = vcmp.eq.s32.totalorder %v44, %v60
    %vm71 = vcmp.eq.s32.totalorder %v44, %v63
    %vm72 = vcmp.eq.s32.totalorder %v44, %v66
    %vm73 = vcmp.eq.s32.totalorder %v44, %v69
    %v74 = vld [vmem:[#allocation4] sm:$0xff]
    %v75 = vld [vmem:[#allocation4 + $0x8] sm:$0xff]
    %v76 = vld [vmem:[#allocation4 + $0x10] sm:$0xff]
    %v77 = vld [vmem:[#allocation4 + $0x18] sm:$0xff]
    %v78 = vsel %vm70, %v49, 0.0
    %v79 = vsel %vm71, %v50, 0.0
    %v80 = vsel %vm72, %v51, 0.0
    %v81 = vsel %vm73, %v52, 0.0
    %82 = vadd.xlane.f32.xlu0 %v78
    %v83 = vpop.xlane.xlu0 %82
    %84 = vadd.xlane.f32.xlu0 %v79
    %v85 = vpop.xlane.xlu0 %84
    %86 = vadd.xlane.f32.xlu0 %v80
    %v87 = vpop.xlane.xlu0 %86
    %88 = vadd.xlane.f32.xlu0 %v81
    %v89 = vpop.xlane.xlu0 %88
    %v90 = vadd.f32 %v74, %v83
    %v91 = vadd.f32 %v75, %v85
    %v92 = vadd.f32 %v76, %v87
    %v93 = vadd.f32 %v77, %v89
    %vm94 = vcmask 7168
    %95 = vst.msk [vmem:[#allocation4] sm:$0xff] %vm94, %v90
    %96 = vst.msk [vmem:[#allocation4 + $0x8] sm:$0xff] %vm94, %v91
    %97 = vst.msk [vmem:[#allocation4 + $0x10] sm:$0xff] %vm94, %v92
    %98 = vst.msk [vmem:[#allocation4 + $0x18] sm:$0xff] %vm94, %v93
    %99 = vmax.xlane.f32.xlu0 %v49
    %v100 = vpop.xlane.xlu0 %99
    %101 = vmax.xlane.f32.xlu0 %v50
    %v102 = vpop.xlane.xlu0 %101
    %103 = vmax.xlane.f32.xlu0 %v51
    %v104 = vpop.xlane.xlu0 %103
    %105 = vmax.xlane.f32.xlu0 %v52
    %v106 = vpop.xlane.xlu0 %105
    %v107 = vld [vmem:[#allocation2] sm:$0xff]
    %v108 = vld [vmem:[#allocation2 + $0x8] sm:$0xff]
    %v109 = vld [vmem:[#allocation2 + $0x10] sm:$0xff]
    %v110 = vld [vmem:[#allocation2 + $0x18] sm:$0xff]
    %v111 = vmax.f32 %v107, %v100
    %v112 = vmax.f32 %v108, %v102
    %v113 = vmax.f32 %v109, %v104
    %v114 = vmax.f32 %v110, %v106
    %v115 = vld [vmem:[#allocation3] sm:$0xff]
    %v116 = vld [vmem:[#allocation3 + $0x8] sm:$0xff]
    %v117 = vld [vmem:[#allocation3 + $0x10] sm:$0xff]
    %v118 = vld [vmem:[#allocation3 + $0x18] sm:$0xff]
    %v119 = vsub.f32 %v107, %v111
    %v120 = vsub.f32 %v108, %v112
    %v121 = vsub.f32 %v109, %v113
    %v122 = vsub.f32 %v110, %v114
    %v123 = vmul.f32 %v119, 1.442695
    %v124 = vpow.pop %v123
    %v125 = vmul.f32 %v120, 1.442695
    %v126 = vpow.pop %v125
    %v127 = vmul.f32 %v121, 1.442695
    %v128 = vpow.pop %v127
    %v129 = vmul.f32 %v122, 1.442695
    %v130 = vpow.pop %v129
    %v131 = vmul.f32 %v115, %v124
    %v132 = vmul.f32 %v116, %v126
    %v133 = vmul.f32 %v117, %v128
    %v134 = vmul.f32 %v118, %v130
    %136 = vset.pattern.permute.xlu0 0
    %137 = vperm.xlu0 %136, %v111
    %v138 = vpop.permute.xlu0 %137
    %141 = vset.pattern.permute.xlu0 0
    %142 = vperm.xlu0 %141, %v112
    %v143 = vpop.permute.xlu0 %142
    %146 = vset.pattern.permute.xlu0 0
    %147 = vperm.xlu0 %146, %v113
    %v148 = vpop.permute.xlu0 %147
    %151 = vset.pattern.permute.xlu0 0
    %152 = vperm.xlu0 %151, %v114
    %v153 = vpop.permute.xlu0 %152
    %v155 = vsub.f32 %v49, %v138
    %v156 = vsub.f32 %v50, %v143
    %v157 = vsub.f32 %v51, %v148
    %v158 = vsub.f32 %v52, %v153
    %v159 = vmul.f32 %v155, 1.442695
    %v160 = vpow.pop %v159
    %v161 = vmul.f32 %v156, 1.442695
    %v162 = vpow.pop %v161
    %v163 = vmul.f32 %v157, 1.442695
    %v164 = vpow.pop %v163
    %v165 = vmul.f32 %v158, 1.442695
    %v166 = vpow.pop %v165
    %167 = vadd.xlane.f32.xlu0 %v160
    %v168 = vpop.xlane.xlu0 %167
    %169 = vadd.xlane.f32.xlu0 %v162
    %v170 = vpop.xlane.xlu0 %169
    %171 = vadd.xlane.f32.xlu0 %v164
    %v172 = vpop.xlane.xlu0 %171
    %173 = vadd.xlane.f32.xlu0 %v166
    %v174 = vpop.xlane.xlu0 %173
    %v175 = vadd.f32 %v131, %v168
    %v176 = vadd.f32 %v132, %v170
    %v177 = vadd.f32 %v133, %v172
    %v178 = vadd.f32 %v134, %v174
    %179 = vst.msk [vmem:[#allocation3] sm:$0xff] %vm94, %v175
    %180 = vst.msk [vmem:[#allocation3 + $0x8] sm:$0xff] %vm94, %v176
    %181 = vst.msk [vmem:[#allocation3 + $0x10] sm:$0xff] %vm94, %v177
    %182 = vst.msk [vmem:[#allocation3 + $0x18] sm:$0xff] %vm94, %v178
    %183 = vst.msk [vmem:[#allocation2] sm:$0xff] %vm94, %v111
    %184 = vst.msk [vmem:[#allocation2 + $0x8] sm:$0xff] %vm94, %v112
    %185 = vst.msk [vmem:[#allocation2 + $0x10] sm:$0xff] %vm94, %v113
    %186 = vst.msk [vmem:[#allocation2 + $0x18] sm:$0xff] %vm94, %v114
    // Predicated region
    $region18: #{tpu_custom_call.1} parent=1 // pred_check
      %p187 = pneg %p18
    $region19: #{tpu_custom_call.1} parent=1 // pred_check_branch
      %189 = sbr.rel (%p187) target = $region21
    $region20: #{tpu_custom_call.1} parent=1 // pred_region
      %v190 = vld [vmem:[#allocation2] sm:$0xff]
      %v191 = vld [vmem:[#allocation2 + $0x8] sm:$0xff]
      %v192 = vld [vmem:[#allocation2 + $0x10] sm:$0xff]
      %v193 = vld [vmem:[#allocation2 + $0x18] sm:$0xff]
      %v194 = vld [vmem:[#allocation3] sm:$0xff]
      %v195 = vld [vmem:[#allocation3 + $0x8] sm:$0xff]
      %v196 = vld [vmem:[#allocation3 + $0x10] sm:$0xff]
      %v197 = vld [vmem:[#allocation3 + $0x18] sm:$0xff]
      %v198 = vlog2.pop %v194
      %v199 = vmul.f32 %v198, 0.6931472
      %v200 = vlog2.pop %v195
      %v201 = vmul.f32 %v200, 0.6931472
      %v202 = vlog2.pop %v196
      %v203 = vmul.f32 %v202, 0.6931472
      %v204 = vlog2.pop %v197
      %v205 = vmul.f32 %v204, 0.6931472
      %v206 = vadd.f32 %v190, %v199
      %v207 = vadd.f32 %v191, %v201
      %v208 = vadd.f32 %v192, %v203
      %v209 = vadd.f32 %v193, %v205
      %v210 = vld [vmem:[%s2] sm:$0xff]
      %v211 = vld [vmem:[%s2 + $0x8] sm:$0xff]
      %v212 = vld [vmem:[%s2 + $0x10] sm:$0xff]
      %v213 = vld [vmem:[%s2 + $0x18] sm:$0xff]
      %v214 = vld [vmem:[#allocation4] sm:$0xff]
      %v215 = vld [vmem:[#allocation4 + $0x8] sm:$0xff]
      %v216 = vld [vmem:[#allocation4 + $0x10] sm:$0xff]
      %v217 = vld [vmem:[#allocation4 + $0x18] sm:$0xff]
      %v218 = vsub.f32 %v206, %v214
      %v219 = vsub.f32 %v207, %v215
      %v220 = vsub.f32 %v208, %v216
      %v221 = vsub.f32 %v209, %v217
      %v222 = vmul.f32 %v210, %v218
      %v223 = vmul.f32 %v211, %v219
      %v224 = vmul.f32 %v212, %v220
      %v225 = vmul.f32 %v213, %v221
      %v226 = vlaneseq
      %v227 = vshrl.u32 %v226, 7
      %v228 = vadd.s32 %v227, 8
      %v229 = vadd.s32 %v227, 16
      %v230 = vadd.s32 %v227, 24
      %s231 = smul.u32 0, 32
      %v232 = vstv %s231
      %v233 = vadd.s32 %v232, %v227
      %v234 = vadd.s32 %v232, %v228
      %v235 = vadd.s32 %v232, %v229
      %v236 = vadd.s32 %v232, %v230
      %vm237 = vcmp.lt.s32.totalorder %v233, 18
      %vm238 = vcmp.lt.s32.totalorder %v234, 18
      %vm239 = vcmp.lt.s32.totalorder %v235, 18
      %vm240 = vcmp.lt.s32.totalorder %v236, 18
      %v241 = vsel %vm237, %v222, 0.0
      %v242 = vsel %vm238, %v223, 0.0
      %v243 = vsel %vm239, %v224, 0.0
      %v244 = vsel %vm240, %v225, 0.0
      %v245 = vsel %vm237, %v210, 0.0
      %v246 = vsel %vm238, %v211, 0.0
      %v247 = vsel %vm239, %v212, 0.0
      %v248 = vsel %vm240, %v213, 0.0
      %v249 = vsel %vm94, %v241, 0.0
      %v250 = vsel %vm94, %v242, 0.0
      %v251 = vadd.f32 %v249, %v250
      %v252 = vsel %vm94, %v243, 0.0
      %v253 = vadd.f32 %v251, %v252
      %v254 = vsel %vm94, %v244, 0.0
      %v255 = vadd.f32 %v253, %v254
      %256 = vadd.xlane.f32.xlu0 %v255
      %v257 = vpop.xlane.xlu0 %256
      %v258 = vrot.slane %v257, 4
      %v259 = vadd.f32 %v257, %v258
      %v260 = vrot.slane %v259, 2
      %v261 = vadd.f32 %v259, %v260
      %v262 = vrot.slane %v261, 1
      %v263 = vadd.f32 %v261, %v262
      %s264 = vtos %v263
      %v265 = vstv %s264
      %266 = vst [vmem:[#allocation5] sm:$0xff] %v265
      %v267 = vsel %vm94, %v245, 0.0
      %v268 = vsel %vm94, %v246, 0.0
      %v269 = vadd.f32 %v267, %v268
      %v270 = vsel %vm94, %v247, 0.0
      %v271 = vadd.f32 %v269, %v270
      %v272 = vsel %vm94, %v248, 0.0
      %v273 = vadd.f32 %v271, %v272
      %274 = vadd.xlane.f32.xlu0 %v273
      %v275 = vpop.xlane.xlu0 %274
      %v276 = vrot.slane %v275, 4
      %v277 = vadd.f32 %v275, %v276
      %v278 = vrot.slane %v277, 2
      %v279 = vadd.f32 %v277, %v278
      %v280 = vrot.slane %v279, 1
      %v281 = vadd.f32 %v279, %v280
      %s282 = vtos %v281
      %v283 = vstv %s282
      %284 = vst [vmem:[#allocation7] sm:$0xff] %v283
    $region21: #{tpu_custom_call.1} parent=1 // pred_fallthru
      _
    // Predicated region
    $region22: #{tpu_custom_call.1} parent=1 // pred_check
      _
    $region23: #{tpu_custom_call.1} parent=1 // pred_check_branch
      %286 = sbr.rel (0) target = $region25
    $region24: #{tpu_custom_call.1} parent=1 // pred_region
      %288 = vsyncadd [#allocation6], 0
      %s290 = sshll.u32 [#allocation5], 4
      %s291 = int_to_ptr.vmem [resolvable:$true] %s290
      %s292 = sshll.u32 %s3, 4
      %s293 = int_to_ptr.hbm [resolvable:$true] %s292
      %295 = dma.vmem_to_hbm [thread:$0]  %s291, 128, %s293, [#allocation6]
    $region25: #{tpu_custom_call.1} parent=1 // pred_fallthru
      _
    // Predicated region
    $region26: #{tpu_custom_call.1} parent=1 // pred_check
      _
    $region27: #{tpu_custom_call.1} parent=1 // pred_check_branch
      %297 = sbr.rel (0) target = $region29
    $region28: #{tpu_custom_call.1} parent=1 // pred_region
      %299 = vsyncadd [#allocation8], 0
      %s301 = sshll.u32 [#allocation7], 4
      %s302 = int_to_ptr.vmem [resolvable:$true] %s301
      %s303 = sshll.u32 %s4, 4
      %s304 = int_to_ptr.hbm [resolvable:$true] %s303
      %306 = dma.vmem_to_hbm [thread:$0]  %s302, 128, %s304, [#allocation8]
    $region29: #{tpu_custom_call.1} parent=1 // pred_fallthru
      _
    // Predicated region
    $region30: #{tpu_custom_call.1} parent=1 // pred_check
      _
    $region31: #{tpu_custom_call.1} parent=1 // pred_check_branch
      %308 = sbr.rel (0) target = $region33
    $region32: #{tpu_custom_call.1} parent=1 // pred_region
      %310 = dma.done [#allocation6], 128
    $region33: #{tpu_custom_call.1} parent=1 // pred_fallthru
      _
    // Predicated region
    $region34: #{tpu_custom_call.1} parent=1 // pred_check
      _
    $region35: #{tpu_custom_call.1} parent=1 // pred_check_branch
      %312 = sbr.rel (0) target = $region37
    $region36: #{tpu_custom_call.1} parent=1 // pred_region
      %314 = dma.done [#allocation8], 128
    $region37: #{tpu_custom_call.1} parent=1 // pred_fallthru
      _
    %315 = vsyncpa [#allocation6], 1
    %316 = vsyncpa [#allocation8], 1

</llo_original>
